<compile_context>
chip_gen: v6e
topology: v6e:2x2x1
jax: 0.10.0
libtpu: 0.0.40
codegen_flags: <defaults>
</compile_context>

<pallas_src>
import functools

import jax
import jax.numpy as jnp
from jax.experimental import pallas as pl
from jax.experimental.pallas import tpu as pltpu


def _round_up(x, m):
    return (x + m - 1) // m * m


# ----------------------------------------------------------------------------
# Pallas kernel: fused (weight_generator || bias_generator) 3-layer MLP.
#   x    : (1, memory_size)
#   w1   : (memory_size, H2)          H2 = 2 * padded_hidden (multiple of 128)
#   w23  : (H2, H2 + Npad)            [ block-diag W2 | block W3 ]
#   b    : (1, 2*H2 + Npad)           [ b1 | b2 | b3 ]      (128-aligned segs)
#   out  : (1, Npad)                  Npad = round_up(in*out + out, 128)
# ----------------------------------------------------------------------------
def _fused_generator_kernel(x_ref, w1_ref, w23_ref, b_ref, o_ref):
    H2 = w1_ref.shape[1]

    x = x_ref[...]                                                    # (1, K)
    h1 = jnp.dot(x, w1_ref[...], preferred_element_type=jnp.float32)
    h1 = jnp.maximum(h1 + b_ref[:, :H2], 0.0)                         # ReLU

    h2 = jnp.dot(h1, w23_ref[:, :H2], preferred_element_type=jnp.float32)
    h2 = jnp.maximum(h2 + b_ref[:, H2:2 * H2], 0.0)                   # ReLU

    o_ref[...] = (
        jnp.dot(h2, w23_ref[:, H2:], preferred_element_type=jnp.float32)
        + b_ref[:, 2 * H2:]
    )


def _fused_generate(mem2d, w1, w23, b_all, n_pad):
    """One pallas_call producing the concatenated (weights_flat | biases)."""
    vmem = functools.partial(pl.BlockSpec, memory_space=pltpu.MemorySpace.VMEM)
    return pl.pallas_call(
        _fused_generator_kernel,
        out_shape=jax.ShapeDtypeStruct((1, n_pad), jnp.float32),
        in_specs=[vmem()] * 4,
        out_specs=vmem(),
    )(mem2d, w1, w23, b_all)


# ----------------------------------------------------------------------------
# Parameter init (matches PyTorch semantics of the original module)
# ----------------------------------------------------------------------------
def _xavier_uniform(key, shape):
    fan_in, fan_out = shape
    bound = jnp.sqrt(6.0 / (fan_in + fan_out))
    return jax.random.uniform(key, shape, jnp.float32, -bound, bound)


def _linear_default_params(key, in_features, out_features):
    """PyTorch nn.Linear default init (kaiming_uniform(a=sqrt(5)) -> bound
    1/sqrt(fan_in) for both weight and bias).  Weight stored as (in, out)."""
    kw, kb = jax.random.split(key)
    bound = 1.0 / jnp.sqrt(jnp.float32(in_features))
    w = jax.random.uniform(kw, (in_features, out_features), jnp.float32, -bound, bound)
    b = jax.random.uniform(kb, (1, out_features), jnp.float32, -bound, bound)
    return w, b


def _pack_fused(wg, bg, memory_size, hidden, n_w, n_b):
    """Pack the two 3-layer MLPs into one fused, lane-aligned parameter set."""
    w1w, b1w, w2w, b2w, w3w, b3w = wg
    w1b, b1b, w2b, b2b, w3b, b3b = bg

    hp = _round_up(hidden, 64)        # so the fused hidden 2*hp is 128-aligned
    h2 = 2 * hp
    n_total = n_w + n_b
    n_pad = _round_up(n_total, 128)   # lane-dense output

    # Layer 1: concatenated along the output axis, zero-padded per block.
    W1 = jnp.zeros((memory_size, h2), jnp.float32)
    W1 = W1.at[:, :hidden].set(w1w).at[:, hp:hp + hidden].set(w1b)
    B1 = jnp.zeros((1, h2), jnp.float32)
    B1 = B1.at[:, :hidden].set(b1w).at[:, hp:hp + hidden].set(b1b)

    # Layer 2: block-diagonal (h2, h2).
    W2 = jnp.zeros((h2, h2), jnp.float32)
    W2 = W2.at[:hidden, :hidden].set(w2w).at[hp:hp + hidden, hp:hp + hidden].set(w2b)
    B2 = jnp.zeros((1, h2), jnp.float32)
    B2 = B2.at[:, :hidden].set(b2w).at[:, hp:hp + hidden].set(b2b)

    # Layer 3: block matrix (h2, n_pad): weight cols [0,n_w), bias cols [n_w,n_total).
    W3 = jnp.zeros((h2, n_pad), jnp.float32)
    W3 = W3.at[:hidden, :n_w].set(w3w).at[hp:hp + hidden, n_w:n_total].set(w3b)
    B3 = jnp.zeros((1, n_pad), jnp.float32)
    B3 = B3.at[:, :n_w].set(b3w).at[:, n_w:n_total].set(b3b)

    W23 = jnp.concatenate([W2, W3], axis=1)        # (h2, h2 + n_pad)
    B_all = jnp.concatenate([B1, B2, B3], axis=1)  # (1, 2*h2 + n_pad)
    return W1, W23, B_all, n_pad


# ----------------------------------------------------------------------------
# ParameterGenerator in JAX
# ----------------------------------------------------------------------------
class ParameterGenerator:
    def __init__(self, memory_size, in_channels, out_channels, hidden_channels,
                 dynamic, key):
        self.in_channels = in_channels
        self.out_channels = out_channels
        self.hidden_channels = hidden_channels
        self.dynamic = dynamic
        if dynamic:
            ks = jax.random.split(key, 6)
            # weight_generator: memory_size -> hidden -> hidden -> in*out
            self.wg = (
                *_linear_default_params(ks[0], memory_size, hidden_channels),
                *_linear_default_params(ks[1], hidden_channels, hidden_channels),
                *_linear_default_params(ks[2], hidden_channels, in_channels * out_channels),
            )
            # bias_generator: memory_size -> hidden -> hidden -> out
            self.bg = (
                *_linear_default_params(ks[3], memory_size, hidden_channels),
                *_linear_default_params(ks[4], hidden_channels, hidden_channels),
                *_linear_default_params(ks[5], hidden_channels, out_channels),
            )
            # Pack once at init into the fused, lane-aligned layout.
            # (Weights could be stored bf16 to halve DMA bytes; kept f32 here
            #  for exact parity with the f32 reference — it is not the
            #  bottleneck at these sizes.)
            self.W1, self.W23, self.B_all, self.n_pad = _pack_fused(
                self.wg, self.bg, memory_size, hidden_channels,
                in_channels * out_channels, out_channels)
        else:
            kw, kb = jax.random.split(key)
            self.weights = _xavier_uniform(kw, (in_channels, out_channels))
            # TODO(synk): PyTorch xavier_uniform_ on a 1-D tensor raises; we
            # init the 1-D bias from a (1, out) xavier and squeeze instead.
            self.biases = _xavier_uniform(kb, (1, out_channels))[0]

    def __call__(self, memory=None):
        if self.dynamic:
            mem2d = memory.reshape(1, -1).astype(jnp.float32)
            out = _fused_generate(mem2d, self.W1, self.W23, self.B_all, self.n_pad)
            n_w = self.in_channels * self.out_channels
            flat = out[0]
            weights = flat[:n_w].reshape(self.in_channels, self.out_channels)
            biases = flat[n_w:n_w + self.out_channels]
            # TODO(synk): the downstream consumer of (weights, biases) lives
            # outside this module; fusing it into this kernel (keeping the
            # generated params in VMEM) would remove an HBM round-trip.
        else:
            weights = self.weights
            biases = self.biases
        return weights, biases


# Pure-JAX reference of one (unfused) 3-layer MLP for verification.
def _mlp3_ref(memory_2d, params):
    w1, b1, w2, b2, w3, b3 = params
    h1 = jnp.maximum(memory_2d @ w1 + b1, 0.0)
    h2 = jnp.maximum(h1 @ w2 + b2, 0.0)
    return h2 @ w3 + b3


if __name__ == "__main__":
    key = jax.random.PRNGKey(0)
    k_param, k_mem = jax.random.split(key)

    memory_size = 32
    in_channels = 8
    out_channels = 16
    hidden_channels = 32

    gen = ParameterGenerator(memory_size, in_channels, out_channels,
                             hidden_channels, dynamic=True, key=k_param)

    memory = jax.random.normal(k_mem, (memory_size,), jnp.float32)

    weights, biases = gen(memory)
    jax.block_until_ready((weights, biases))

    assert weights.shape == (in_channels, out_channels)
    assert biases.shape == (out_channels,)

    # Verify the fused Pallas kernel against the unfused pure-JAX reference.
    mem2d = memory.reshape(1, -1)
    w_ref = _mlp3_ref(mem2d, gen.wg).reshape(in_channels, out_channels)
    b_ref = _mlp3_ref(mem2d, gen.bg).reshape(out_channels)
    assert jnp.allclose(weights, w_ref, atol=1e-5, rtol=1e-5)
    assert jnp.allclose(biases, b_ref, atol=1e-5, rtol=1e-5)

    # Also exercise the non-dynamic branch for shape correctness.
    gen_fc = ParameterGenerator(memory_size, in_channels, out_channels,
                                hidden_channels, dynamic=False, key=k_param)
    w_fc, b_fc = gen_fc()
    assert w_fc.shape == (in_channels, out_channels) and b_fc.shape == (out_channels,)

    print("KERNEL_OK")
</pallas_src>

<mosaic_0001>
module attributes {stable_mosaic.version = 11 : i64} {
  func.func @_fused_generator_kernel(%arg0: memref<1x32xf32, #tpu.memory_space<vmem>>, %arg1: memref<32x128xf32, #tpu.memory_space<vmem>>, %arg2: memref<128x384xf32, #tpu.memory_space<vmem>>, %arg3: memref<1x512xf32, #tpu.memory_space<vmem>>, %arg4: memref<1x256xf32, #tpu.memory_space<vmem>>) attributes {dimension_semantics = [], scalar_prefetch = 0 : i64, scratch_operands = 0 : i64, tpu.core_type = #tpu.core_type<tc>} {
    %c0 = arith.constant 0 : index
    %c0_0 = arith.constant 0 : index
    %0 = vector.load %arg0[%c0, %c0_0] : memref<1x32xf32, #tpu.memory_space<vmem>>, vector<1x32xf32>
    %c0_1 = arith.constant 0 : index
    %c0_2 = arith.constant 0 : index
    %1 = vector.load %arg1[%c0_1, %c0_2] : memref<32x128xf32, #tpu.memory_space<vmem>>, vector<32x128xf32>
    %cst = arith.constant dense<0.000000e+00> : vector<1x128xf32>
    %2 = tpu.matmul %0, %1, %cst {dimension_numbers = #tpu.dot_dimension_numbers<[1], [0], [0], [1], [0, 0, 1, 1], [], []>} : vector<1x32xf32>, vector<32x128xf32>, vector<1x128xf32> -> vector<1x128xf32>
    %c0_3 = arith.constant 0 : index
    %c0_4 = arith.constant 0 : index
    %3 = vector.load %arg3[%c0_3, %c0_4] : memref<1x512xf32, #tpu.memory_space<vmem>>, vector<1x128xf32>
    %4 = arith.addf %2, %3 : vector<1x128xf32>
    %cst_5 = arith.constant 0.000000e+00 : f32
    %5 = vector.broadcast %cst_5 : f32 to vector<1x128xf32>
    %6 = arith.maximumf %4, %5 : vector<1x128xf32>
    %c0_6 = arith.constant 0 : index
    %c0_7 = arith.constant 0 : index
    %7 = vector.load %arg2[%c0_6, %c0_7] : memref<128x384xf32, #tpu.memory_space<vmem>>, vector<128x128xf32>
    %cst_8 = arith.constant dense<0.000000e+00> : vector<1x128xf32>
    %8 = tpu.matmul %6, %7, %cst_8 {dimension_numbers = #tpu.dot_dimension_numbers<[1], [0], [0], [1], [0, 0, 1, 1], [], []>} : vector<1x128xf32>, vector<128x128xf32>, vector<1x128xf32> -> vector<1x128xf32>
    %c0_9 = arith.constant 0 : index
    %c128 = arith.constant 128 : index
    %9 = vector.load %arg3[%c0_9, %c128] : memref<1x512xf32, #tpu.memory_space<vmem>>, vector<1x128xf32>
    %10 = arith.addf %8, %9 : vector<1x128xf32>
    %cst_10 = arith.constant 0.000000e+00 : f32
    %11 = vector.broadcast %cst_10 : f32 to vector<1x128xf32>
    %12 = arith.maximumf %10, %11 : vector<1x128xf32>
    %c0_11 = arith.constant 0 : index
    %c128_12 = arith.constant 128 : index
    %13 = vector.load %arg2[%c0_11, %c128_12] : memref<128x384xf32, #tpu.memory_space<vmem>>, vector<128x256xf32>
    %cst_13 = arith.constant dense<0.000000e+00> : vector<1x256xf32>
    %14 = tpu.matmul %12, %13, %cst_13 {dimension_numbers = #tpu.dot_dimension_numbers<[1], [0], [0], [1], [0, 0, 1, 1], [], []>} : vector<1x128xf32>, vector<128x256xf32>, vector<1x256xf32> -> vector<1x256xf32>
    %c0_14 = arith.constant 0 : index
    %c256 = arith.constant 256 : index
    %15 = vector.load %arg3[%c0_14, %c256] : memref<1x512xf32, #tpu.memory_space<vmem>>, vector<1x256xf32>
    %16 = arith.addf %14, %15 : vector<1x256xf32>
    %c0_15 = arith.constant 0 : index
    %c0_16 = arith.constant 0 : index
    %17 = vector.load %arg4[%c0_15, %c0_16] : memref<1x256xf32, #tpu.memory_space<vmem>>, vector<1x256xf32>
    tpu.vector_store %arg4[%c0_15, %c0_16], %16 {strides = array<i32>} : memref<1x256xf32, #tpu.memory_space<vmem>>, vector<1x256xf32>,
    return
  }
}

</mosaic_0001>

<llo_original>
// kernel: tpu_custom_call.1
$region0: #{tpu_custom_call.1}
  #allocation0 [shape = 'u32[]', space=smem, size = 0x4, offset = 0x4, fixed_abs, tag = 'smem constant byte address 0x4 - core index']
  #allocation1 [shape = 'u32[144,128]{1,0:T(1,128)}', space=vmem, size = 0x12000, scoped, tag = 'internal scratch']
  %s0 = inlined_call_operand.hbm [shape: f32[1,32], index: 0, kind: input, shape index: {}]
  %s1 = inlined_call_operand.hbm [shape: f32[32,128], index: 1, kind: input, shape index: {}]
  %s2 = inlined_call_operand.hbm [shape: f32[128,384], index: 2, kind: input, shape index: {}]
  %s3 = inlined_call_operand.vmem [shape: f32[1,512], index: 3, kind: input, shape index: {}]
  %s4 = inlined_call_operand.hbm [shape: f32[1,256], index: 4, kind: output, shape index: {}]
  %s5 = sld [smem:[#allocation0]]
  $region38: #{tpu_custom_call.1} parent=0
    _
  %s7 = ssub.s32 1, %s5
  %s8 = scalar_select 0, %s7, %s5
  $region1: #{tpu_custom_call.1} parent=0
    #allocation2 [shape = 'u8[512]{0}', space=vmem, size = 0x400, scoped, tag = 'input window, operand 0, single buffered']
    #allocation3 [shape = 's32[1]{0}', space=sflag, size = 0x4, scoped, tag = 'scoped memory for tpu_custom_call.1']
    #allocation4 [shape = 's32[1]{0}', space=sflag, size = 0x4, scoped, tag = 'scoped memory for tpu_custom_call.1']
    #allocation5 [shape = 'u8[16384]{0}', space=vmem, size = 0x4000, scoped, tag = 'input window, operand 1, single buffered']
    #allocation6 [shape = 's32[1]{0}', space=sflag, size = 0x4, scoped, tag = 'scoped memory for tpu_custom_call.1']
    #allocation7 [shape = 'u8[196608]{0}', space=vmem, size = 0x30000, scoped, tag = 'input window, operand 2, single buffered']
    #allocation8 [shape = 'u8[1024]{0}', space=vmem, size = 0x400, scoped, tag = 'output window, operand 0, single buffered']
    %9 = vsyncpa [#allocation3], 0
    %10 = vsyncpa [#allocation6], 0
    %11 = vsyncpa [#allocation4], 0
    // Predicated region
    $region2: #{tpu_custom_call.1} parent=1 // pred_check
      _
    $region3: #{tpu_custom_call.1} parent=1 // pred_check_branch
      %13 = sbr.rel (0) target = $region5
    $region4: #{tpu_custom_call.1} parent=1 // pred_region
      %s15 = ssub.s32 16, 16
      %16 = vsyncadd [#allocation3], %s15
      %s18 = sshll.u32 [#allocation2], 4
      %s19 = int_to_ptr.vmem [resolvable:$true] %s18
      %21 = dma.hbm_to_vmem [thread:$0]  %s0, 16, %s19, [#allocation3]
    $region5: #{tpu_custom_call.1} parent=1 // pred_fallthru
      _
    // Predicated region
    $region6: #{tpu_custom_call.1} parent=1 // pred_check
      _
    $region7: #{tpu_custom_call.1} parent=1 // pred_check_branch
      %23 = sbr.rel (0) target = $region9
    $region8: #{tpu_custom_call.1} parent=1 // pred_region
      %s25 = ssub.s32 512, 512
      %26 = vsyncadd [#allocation6], %s25
      %s27 = sshll.u32 [#allocation5], 4
      %s28 = int_to_ptr.vmem [resolvable:$true] %s27
      %33 = dma.hbm_to_vmem [thread:$0]  %s1, 512, %s28, [#allocation6], 128, 128, 8
    $region9: #{tpu_custom_call.1} parent=1 // pred_fallthru
      _
    // Predicated region
    $region10: #{tpu_custom_call.1} parent=1 // pred_check
      _
    $region11: #{tpu_custom_call.1} parent=1 // pred_check_branch
      %35 = sbr.rel (0) target = $region13
    $region12: #{tpu_custom_call.1} parent=1 // pred_region
      %s37 = ssub.s32 6144, 6144
      %38 = vsyncadd [#allocation6], %s37
      %s39 = sshll.u32 [#allocation7], 4
      %s40 = int_to_ptr.vmem [resolvable:$true] %s39
      %45 = dma.hbm_to_vmem [thread:$0]  %s2, 6144, %s40, [#allocation6], 384, 384, 24
    $region13: #{tpu_custom_call.1} parent=1 // pred_fallthru
      _
    // Predicated region
    $region14: #{tpu_custom_call.1} parent=1 // pred_check
      _
    $region15: #{tpu_custom_call.1} parent=1 // pred_check_branch
      %47 = sbr.rel (0) target = $region17
    $region16: #{tpu_custom_call.1} parent=1 // pred_region
      _
    $region17: #{tpu_custom_call.1} parent=1 // pred_fallthru
      _
    // Predicated region
    $region18: #{tpu_custom_call.1} parent=1 // pred_check
      _
    $region19: #{tpu_custom_call.1} parent=1 // pred_check_branch
      %49 = sbr.rel (0) target = $region21
    $region20: #{tpu_custom_call.1} parent=1 // pred_region
      %50 = dma.done [#allocation3], 16
    $region21: #{tpu_custom_call.1} parent=1 // pred_fallthru
      _
    // Predicated region
    $region22: #{tpu_custom_call.1} parent=1 // pred_check
      _
    $region23: #{tpu_custom_call.1} parent=1 // pred_check_branch
      %52 = sbr.rel (0) target = $region25
    $region24: #{tpu_custom_call.1} parent=1 // pred_region
      %53 = dma.done [#allocation6], 512
    $region25: #{tpu_custom_call.1} parent=1 // pred_fallthru
      _
    // Predicated region
    $region26: #{tpu_custom_call.1} parent=1 // pred_check
      _
    $region27: #{tpu_custom_call.1} parent=1 // pred_check_branch
      %55 = sbr.rel (0) target = $region29
    $region28: #{tpu_custom_call.1} parent=1 // pred_region
      %56 = dma.done [#allocation6], 6144
    $region29: #{tpu_custom_call.1} parent=1 // pred_fallthru
      _
    %v57 = vld [vmem:[#allocation2] sm:$0x1]
    %v58 = vld [vmem:[#allocation5] sm:$0xff]
    %v59 = vld [vmem:[#allocation5 + $0x8] sm:$0xff]
    %v60 = vld [vmem:[#allocation5 + $0x10] sm:$0xff]
    %v61 = vld [vmem:[#allocation5 + $0x18] sm:$0xff]
    %v62 = vld [vmem:[%s3] sm:$0x1]
    %vm63 = vcmask 261120
    %v65 = vsel %vm63, %v57, 0
    %67 = vmatprep.subr.mxu0 0.0
    %68 = vmatpush1.msra.mxu0 0.0
    %69 = vmatprep.subr.mxu0 0.0
    %70 = vmatpush1.msra.mxu0 0.0
    %71 = vmatprep.subr.mxu0 0.0
    %72 = vmatpush1.msra.mxu0 0.0
    %73 = vmatprep.subr.mxu0 0.0
    %74 = vmatpush1.msra.mxu0 0.0
    %75 = vmatprep.subr.mxu0 0.0
    %76 = vmatpush1.msra.mxu0 0.0
    %77 = vmatprep.subr.mxu0 0.0
    %78 = vmatpush1.msra.mxu0 0.0
    %79 = vmatprep.subr.mxu0 0.0
    %80 = vmatpush1.msra.mxu0 0.0
    %81 = vmatprep.subr.mxu0 0.0
    %82 = vmatpush1.msra.mxu0 0.0
    %83 = vmatprep.subr.mxu0 0.0
    %84 = vmatpush1.msra.mxu0 0.0
    %85 = vmatprep.subr.mxu0 0.0
    %86 = vmatpush1.msra.mxu0 0.0
    %87 = vmatprep.subr.mxu0 0.0
    %88 = vmatpush1.msra.mxu0 0.0
    %89 = vmatprep.subr.mxu0 0.0
    %90 = vmatpush1.msra.mxu0 0.0
    %91 = vmatprep.subr.mxu0 0.0
    %92 = vmatpush1.msra.mxu0 %v61
    %93 = vmatprep.subr.mxu0 0.0
    %94 = vmatpush1.msra.mxu0 %v60
    %95 = vmatprep.subr.mxu0 0.0
    %96 = vmatpush1.msra.mxu0 %v59
    %97 = vmatprep.subr.mxu0 0.0
    %98 = vmatpush1.msra.mxu0 %v58
    %99 = vmatprep.subr.mxu0 0.0
    %100 = vmatpush2.msra.mxu0 0.0
    %101 = vmatprep.subr.mxu0 0.0
    %102 = vmatpush2.msra.mxu0 0.0
    %103 = vmatprep.subr.mxu0 0.0
    %104 = vmatpush2.msra.mxu0 0.0
    %105 = vmatprep.subr.mxu0 0.0
    %106 = vmatpush2.msra.mxu0 0.0
    %107 = vmatprep.subr.mxu0 0.0
    %108 = vmatpush2.msra.mxu0 0.0
    %109 = vmatprep.subr.mxu0 0.0
    %110 = vmatpush2.msra.mxu0 0.0
    %111 = vmatprep.subr.mxu0 0.0
    %112 = vmatpush2.msra.mxu0 0.0
    %113 = vmatprep.subr.mxu0 0.0
    %114 = vmatpush2.msra.mxu0 0.0
    %115 = vmatprep.subr.mxu0 0.0
    %116 = vmatpush2.msra.mxu0 0.0
    %117 = vmatprep.subr.mxu0 0.0
    %118 = vmatpush2.msra.mxu0 0.0
    %119 = vmatprep.subr.mxu0 0.0
    %120 = vmatpush2.msra.mxu0 0.0
    %121 = vmatprep.subr.mxu0 0.0
    %122 = vmatpush2.msra.mxu0 0.0
    %123 = vmatprep.subr.mxu0 0.0
    %124 = vmatpush2.msra.mxu0 0.0
    %125 = vmatprep.subr.mxu0 0.0
    %126 = vmatpush2.msra.mxu0 0.0
    %127 = vmatprep.subr.mxu0 0.0
    %128 = vmatpush2.msra.mxu0 0.0
    %129 = vmatprep.subr.mxu0 0.0
    %130 = vmatpush2.msra.mxu0 0.0
    %131 = vmatprep.mubr.f32.mxu0 0.0
    %132 = vmatmul.mubr.f32.gmra.mxu0 %v65
    %v133 = vpop.f32.mrf.mxu0
    %v134 = vadd.f32 %v62, %v133
    %v135 = vpop.f32.mrf.mxu0
    %136 = vdwg.mxu0
    %v137 = vmax.f32 %v134, 0.0
    %v138 = vld [vmem:[#allocation7] sm:$0xff]
    %v139 = vld [vmem:[#allocation7 + $0x18] sm:$0xff]
    %v140 = vld [vmem:[#allocation7 + $0x30] sm:$0xff]
    %v141 = vld [vmem:[#allocation7 + $0x48] sm:$0xff]
    %v142 = vld [vmem:[#allocation7 + $0x60] sm:$0xff]
    %v143 = vld [vmem:[#allocation7 + $0x78] sm:$0xff]
    %v144 = vld [vmem:[#allocation7 + $0x90] sm:$0xff]
    %v145 = vld [vmem:[#allocation7 + $0xa8] sm:$0xff]
    %v146 = vld [vmem:[#allocation7 + $0xc0] sm:$0xff]
    %v147 = vld [vmem:[#allocation7 + $0xd8] sm:$0xff]
    %v148 = vld [vmem:[#allocation7 + $0xf0] sm:$0xff]
    %v149 = vld [vmem:[#allocation7 + $0x108] sm:$0xff]
    %v150 = vld [vmem:[#allocation7 + $0x120] sm:$0xff]
    %v151 = vld [vmem:[#allocation7 + $0x138] sm:$0xff]
    %v152 = vld [vmem:[#allocation7 + $0x150] sm:$0xff]
    %v153 = vld [vmem:[#allocation7 + $0x168] sm:$0xff]
    %v154 = vld [vmem:[%s3 + $0x1] sm:$0x1]
    %155 = vmatprep.subr.mxu0 0.0
    %156 = vmatpush1.msra.mxu0 %v153
    %157 = vmatprep.subr.mxu0 0.0
    %158 = vmatpush1.msra.mxu0 %v152
    %159 = vmatprep.subr.mxu0 0.0
    %160 = vmatpush1.msra.mxu0 %v151
    %161 = vmatprep.subr.mxu0 0.0
    %162 = vmatpush1.msra.mxu0 %v150
    %163 = vmatprep.subr.mxu0 0.0
    %164 = vmatpush1.msra.mxu0 %v149
    %165 = vmatprep.subr.mxu0 0.0
    %166 = vmatpush1.msra.mxu0 %v148
    %167 = vmatprep.subr.mxu0 0.0
    %168 = vmatpush1.msra.mxu0 %v147
    %169 = vmatprep.subr.mxu0 0.0
    %170 = vmatpush1.msra.mxu0 %v146
    %171 = vmatprep.subr.mxu0 0.0
    %172 = vmatpush1.msra.mxu0 %v145
    %173 = vmatprep.subr.mxu0 0.0
    %174 = vmatpush1.msra.mxu0 %v144
    %175 = vmatprep.subr.mxu0 0.0
    %176 = vmatpush1.msra.mxu0 %v143
    %177 = vmatprep.subr.mxu0 0.0
    %178 = vmatpush1.msra.mxu0 %v142
    %179 = vmatprep.subr.mxu0 0.0
    %180 = vmatpush1.msra.mxu0 %v141
    %181 = vmatprep.subr.mxu0 0.0
    %182 = vmatpush1.msra.mxu0 %v140
    %183 = vmatprep.subr.mxu0 0.0
    %184 = vmatpush1.msra.mxu0 %v139
    %185 = vmatprep.subr.mxu0 0.0
    %186 = vmatpush1.msra.mxu0 %v138
    %187 = vmatprep.subr.mxu0 0.0
    %188 = vmatpush2.msra.mxu0 0.0
    %189 = vmatprep.subr.mxu0 0.0
    %190 = vmatpush2.msra.mxu0 0.0
    %191 = vmatprep.subr.mxu0 0.0
    %192 = vmatpush2.msra.mxu0 0.0
    %193 = vmatprep.subr.mxu0 0.0
    %194 = vmatpush2.msra.mxu0 0.0
    %195 = vmatprep.subr.mxu0 0.0
    %196 = vmatpush2.msra.mxu0 0.0
    %197 = vmatprep.subr.mxu0 0.0
    %198 = vmatpush2.msra.mxu0 0.0
    %199 = vmatprep.subr.mxu0 0.0
    %200 = vmatpush2.msra.mxu0 0.0
    %201 = vmatprep.subr.mxu0 0.0
    %202 = vmatpush2.msra.mxu0 0.0
    %203 = vmatprep.subr.mxu0 0.0
    %204 = vmatpush2.msra.mxu0 0.0
    %205 = vmatprep.subr.mxu0 0.0
    %206 = vmatpush2.msra.mxu0 0.0
    %207 = vmatprep.subr.mxu0 0.0
    %208 = vmatpush2.msra.mxu0 0.0
    %209 = vmatprep.subr.mxu0 0.0
    %210 = vmatpush2.msra.mxu0 0.0
    %211 = vmatprep.subr.mxu0 0.0
    %212 = vmatpush2.msra.mxu0 0.0
    %213 = vmatprep.subr.mxu0 0.0
    %214 = vmatpush2.msra.mxu0 0.0
    %215 = vmatprep.subr.mxu0 0.0
    %216 = vmatpush2.msra.mxu0 0.0
    %217 = vmatprep.subr.mxu0 0.0
    %218 = vmatpush2.msra.mxu0 0.0
    %219 = vmatprep.mubr.f32.mxu0 0.0
    %220 = vmatmul.mubr.f32.gmra.mxu0 %v137
    %v221 = vpop.f32.mrf.mxu0
    %v222 = vadd.f32 %v154, %v221
    %v223 = vpop.f32.mrf.mxu0
    %224 = vdwg.mxu0
    %v225 = vmax.f32 %v222, 0.0
    %v226 = vld [vmem:[#allocation7 + $0x8] sm:$0xff]
    %v227 = vld [vmem:[#allocation7 + $0x10] sm:$0xff]
    %v228 = vld [vmem:[#allocation7 + $0x20] sm:$0xff]
    %v229 = vld [vmem:[#allocation7 + $0x28] sm:$0xff]
    %v230 = vld [vmem:[#allocation7 + $0x38] sm:$0xff]
    %v231 = vld [vmem:[#allocation7 + $0x40] sm:$0xff]
    %v232 = vld [vmem:[#allocation7 + $0x50] sm:$0xff]
    %v233 = vld [vmem:[#allocation7 + $0x58] sm:$0xff]
    %v234 = vld [vmem:[#allocation7 + $0x68] sm:$0xff]
    %v235 = vld [vmem:[#allocation7 + $0x70] sm:$0xff]
    %v236 = vld [vmem:[#allocation7 + $0x80] sm:$0xff]
    %v237 = vld [vmem:[#allocation7 + $0x88] sm:$0xff]
    %v238 = vld [vmem:[#allocation7 + $0x98] sm:$0xff]
    %v239 = vld [vmem:[#allocation7 + $0xa0] sm:$0xff]
    %v240 = vld [vmem:[#allocation7 + $0xb0] sm:$0xff]
    %v241 = vld [vmem:[#allocation7 + $0xb8] sm:$0xff]
    %v242 = vld [vmem:[#allocation7 + $0xc8] sm:$0xff]
    %v243 = vld [vmem:[#allocation7 + $0xd0] sm:$0xff]
    %v244 = vld [vmem:[#allocation7 + $0xe0] sm:$0xff]
    %v245 = vld [vmem:[#allocation7 + $0xe8] sm:$0xff]
    %v246 = vld [vmem:[#allocation7 + $0xf8] sm:$0xff]
    %v247 = vld [vmem:[#allocation7 + $0x100] sm:$0xff]
    %v248 = vld [vmem:[#allocation7 + $0x110] sm:$0xff]
    %v249 = vld [vmem:[#allocation7 + $0x118] sm:$0xff]
    %v250 = vld [vmem:[#allocation7 + $0x128] sm:$0xff]
    %v251 = vld [vmem:[#allocation7 + $0x130] sm:$0xff]
    %v252 = vld [vmem:[#allocation7 + $0x140] sm:$0xff]
    %v253 = vld [vmem:[#allocation7 + $0x148] sm:$0xff]
    %v254 = vld [vmem:[#allocation7 + $0x158] sm:$0xff]
    %v255 = vld [vmem:[#allocation7 + $0x160] sm:$0xff]
    %v256 = vld [vmem:[#allocation7 + $0x170] sm:$0xff]
    %v257 = vld [vmem:[#allocation7 + $0x178] sm:$0xff]
    %v258 = vld [vmem:[%s3 + $0x2] sm:$0x3]
    %v260 = vlaneseq
    %v261 = vshrl.u32 %v260, 7
    %v262 = vsub.s32 0, %v261
    %v263 = vrot.slane %v258, %v262
    %v264 = vlaneseq
    %v265 = vshrl.u32 %v264, 7
    %v266 = vsub.s32 1, %v265
    %v267 = vrot.slane %v258, %v266
    %270 = vmatprep.subr.mxu0 %v257
    %271 = vmatpush1.msra.mxu0 %v256
    %272 = vmatprep.subr.mxu0 %v255
    %273 = vmatpush1.msra.mxu0 %v254
    %274 = vmatprep.subr.mxu0 %v253
    %275 = vmatpush1.msra.mxu0 %v252
    %276 = vmatprep.subr.mxu0 %v251
    %277 = vmatpush1.msra.mxu0 %v250
    %278 = vmatprep.subr.mxu0 %v249
    %279 = vmatpush1.msra.mxu0 %v248
    %280 = vmatprep.subr.mxu0 %v247
    %281 = vmatpush1.msra.mxu0 %v246
    %282 = vmatprep.subr.mxu0 %v245
    %283 = vmatpush1.msra.mxu0 %v244
    %284 = vmatprep.subr.mxu0 %v243
    %285 = vmatpush1.msra.mxu0 %v242
    %286 = vmatprep.subr.mxu0 %v241
    %287 = vmatpush1.msra.mxu0 %v240
    %288 = vmatprep.subr.mxu0 %v239
    %289 = vmatpush1.msra.mxu0 %v238
    %290 = vmatprep.subr.mxu0 %v237
    %291 = vmatpush1.msra.mxu0 %v236
    %292 = vmatprep.subr.mxu0 %v235
    %293 = vmatpush1.msra.mxu0 %v234
    %294 = vmatprep.subr.mxu0 %v233
    %295 = vmatpush1.msra.mxu0 %v232
    %296 = vmatprep.subr.mxu0 %v231
    %297 = vmatpush1.msra.mxu0 %v230
    %298 = vmatprep.subr.mxu0 %v229
    %299 = vmatpush1.msra.mxu0 %v228
    %300 = vmatprep.subr.mxu0 %v227
    %301 = vmatpush1.msra.mxu0 %v226
    %302 = vmatprep.subr.mxu0 0.0
    %303 = vmatpush2.msra.mxu0 0.0
    %304 = vmatprep.subr.mxu0 0.0
    %305 = vmatpush2.msra.mxu0 0.0
    %306 = vmatprep.subr.mxu0 0.0
    %307 = vmatpush2.msra.mxu0 0.0
    %308 = vmatprep.subr.mxu0 0.0
    %309 = vmatpush2.msra.mxu0 0.0
    %310 = vmatprep.subr.mxu0 0.0
    %311 = vmatpush2.msra.mxu0 0.0
    %312 = vmatprep.subr.mxu0 0.0
    %313 = vmatpush2.msra.mxu0 0.0
    %314 = vmatprep.subr.mxu0 0.0
    %315 = vmatpush2.msra.mxu0 0.0
    %316 = vmatprep.subr.mxu0 0.0
    %317 = vmatpush2.msra.mxu0 0.0
    %318 = vmatprep.subr.mxu0 0.0
    %319 = vmatpush2.msra.mxu0 0.0
    %320 = vmatprep.subr.mxu0 0.0
    %321 = vmatpush2.msra.mxu0 0.0
    %322 = vmatprep.subr.mxu0 0.0
    %323 = vmatpush2.msra.mxu0 0.0
    %324 = vmatprep.subr.mxu0 0.0
    %325 = vmatpush2.msra.mxu0 0.0
    %326 = vmatprep.subr.mxu0 0.0
    %327 = vmatpush2.msra.mxu0 0.0
    %328 = vmatprep.subr.mxu0 0.0
    %329 = vmatpush2.msra.mxu0 0.0
    %330 = vmatprep.subr.mxu0 0.0
    %331 = vmatpush2.msra.mxu0 0.0
    %332 = vmatprep.subr.mxu0 0.0
    %333 = vmatpush2.msra.mxu0 0.0
    %334 = vmatprep.mubr.f32.mxu0 0.0
    %335 = vmatmul.mubr.f32.gmra.mxu0 %v225
    %v336 = vpop.f32.mrf.mxu0
    %v337 = vadd.f32 %v263, %v336
    %v338 = vpop.f32.mrf.mxu0
    %v339 = vadd.f32 %v267, %v338
    %340 = vdwg.mxu0
    %v343 = vcombine.low %v337, %v339
    %v345 = vunpack.c.l.s4 1966171168
    %v346 = vunpack.c.0.s8 %v345
    %v347 = vlaneseq
    %v348 = vshrl.u32 %v347, 7
    %v349 = vsub.s32 %v346, %v348
    %v350 = vrot.slane %v343, %v349
    %v352 = vunpack.c.l.s4 1966171168
    %v353 = vunpack.c.0.s8 %v352
    %v354 = vlaneseq
    %v355 = vshrl.u32 %v354, 7
    %v356 = vsub.s32 %v353, %v355
    %v357 = vrot.slane %v350, %v356
    %v359 = vlaneseq
    %vm360 = vcmp.ge.s32.totalorder %v359, 0
    %vm361 = vcmp.lt.s32.totalorder %v359, 256
    %vm362 = vmand %vm360, %vm361
    %363 = vst.msk [vmem:[#allocation8] sm:$0x3] %vm362, %v357
    // Predicated region
    $region30: #{tpu_custom_call.1} parent=1 // pred_check
      _
    $region31: #{tpu_custom_call.1} parent=1 // pred_check_branch
      %365 = sbr.rel (0) target = $region33
    $region32: #{tpu_custom_call.1} parent=1 // pred_region
      %s367 = ssub.s32 32, 32
      %368 = vsyncadd [#allocation4], %s367
      %s370 = sshll.u32 [#allocation8], 4
      %s371 = int_to_ptr.vmem [resolvable:$true] %s370
      %373 = dma.vmem_to_hbm [thread:$0]  %s371, 32, %s4, [#allocation4]
    $region33: #{tpu_custom_call.1} parent=1 // pred_fallthru
      _
    // Predicated region
    $region34: #{tpu_custom_call.1} parent=1 // pred_check
      _
    $region35: #{tpu_custom_call.1} parent=1 // pred_check_branch
      %375 = sbr.rel (0) target = $region37
    $region36: #{tpu_custom_call.1} parent=1 // pred_region
      %376 = dma.done [#allocation4], 32
    $region37: #{tpu_custom_call.1} parent=1 // pred_fallthru
      _
    %377 = vsyncpa [#allocation3], 1
    %378 = vsyncpa [#allocation6], 1
    %379 = vsyncpa [#allocation4], 1

</llo_original>
